<compile_context>
chip_gen: v5e
topology: v5e:2x2
jax: 0.10.0
libtpu: 0.0.40
codegen_flags: <defaults>
</compile_context>

<pallas_src>
import jax
import jax.numpy as jnp
from jax.experimental import pallas as pl
from jax.experimental.pallas import tpu as pltpu


def gated_attention_kernel(x_ref, w_ref, b_ref, ww_ref, o_ref):
    # x_ref : (C, bt*N)   channel-major tokens, batch tile folded into lanes
    # w_ref : (2H, C)     fused [Wv; Wu] projection (PyTorch (out, in) layout)
    # b_ref : (2H, 1)     fused [bv; bu] bias
    # ww_ref: (H, 1)      attention_weights vector (Linear(H -> 1))
    # o_ref : (bt, N)     per-sample softmax scores (token axis on lanes)
    bt, n = o_ref.shape
    hid = ww_ref.shape[0]

    # One lane-dense MXU matmul produces both projections for the whole tile:
    # (2H, C) @ (C, bt*N) -> (2H, bt*N).
    r = jnp.dot(w_ref[...], x_ref[...], preferred_element_type=jnp.float32)
    r = r + b_ref[...]                        # (2H,1) broadcast, once per step

    v = jnp.tanh(r[:hid])                     # (H, bt*N)  EUP, full lanes
    u = jax.nn.sigmoid(r[hid:])               # (H, bt*N)

    # Linear(H -> 1): VPU multiply + sublane reduce over H (MXU/XLU have slack,
    # keeps the EUP critical path clean).  Result is one packed score row.
    s = jnp.sum(u * v * ww_ref[...], axis=0, keepdims=True)   # (1, bt*N)

    # De-pack lanes -> (sample, token) rows with static lane slices (tiny VMEM
    # copies); o_ref's VMEM block doubles as the staging buffer.
    for j in range(bt):
        o_ref[j:j + 1, :] = s[:, j * n:(j + 1) * n]

    # Vectorized per-sample softmax over the token (lane) axis, then one
    # full-block store.
    sc = o_ref[...]                                            # (bt, N)
    sc = sc - jnp.max(sc, axis=-1, keepdims=True)
    e = jnp.exp(sc)
    inv = pl.reciprocal(jnp.sum(e, axis=-1, keepdims=True), approx=True)
    o_ref[...] = (e * inv).astype(o_ref.dtype)


def _choose_b_tile(b, c, n):
    """Samples per grid step: lane-pack to >=256 lanes, keep the f32 x-tile
    under ~4 MiB (double-buffered fits v7x's smaller scoped VMEM), honor the
    (8, 128) sub-block tiling rule, and prefer >=2 grid steps (v7x dual-TC)."""
    if c % 8 != 0:
        return b                                 # full-array blocks are always legal
    bytes_per_sample = c * n * 4
    vmem_cap = max(1, (4 << 20) // bytes_per_sample)
    lane_target = max(1, pl.cdiv(256, n))
    best = b                                     # fallback: single step, full pack
    for d in range(1, b + 1):
        if b % d:
            continue
        if d != b and d % 8:                     # out-block sublane dim must be 8-aligned
            continue
        if d < lane_target or d > vmem_cap:
            continue
        if b // d >= 2:                          # keep the grid pipelined / dual-TC
            best = d                             # largest qualifying divisor wins
    return best


def gated_attention(x, wv, bv, wu, bu, ww, bw=None, *, b_tile=None):
    """x: (b, c, h, w) float32 NCHW. Returns (b, 1, h, w) softmax attention.

    Weights are given in (in, out) layout (transposed vs PyTorch's (out, in)).
    `bw` is accepted for API parity but unused: the per-sample softmax is
    invariant to a constant shift of the scores.
    """
    b, c, h, w_sp = x.shape
    n = h * w_sp
    hid = wv.shape[1]
    if b_tile is None:
        b_tile = _choose_b_tile(b, c, n)
    assert b % b_tile == 0, (b, b_tile)
    g = b // b_tile

    x_f32 = x.astype(jnp.float32)
    # (b,c,h,w) -> (g, bt, c, n) -> (g, c, bt, n) -> (g*c, bt*n): one XLA
    # transpose that folds the batch tile into the 128-lane token axis so every
    # kernel op runs at full lane occupancy.
    x_packed = (x_f32.reshape(g, b_tile, c, n)
                .transpose(0, 2, 1, 3)
                .reshape(g * c, b_tile * n))

    # Fuse the two projections: (2H, C) weight, (2H, 1) bias (done once, tiny).
    w_fused = jnp.concatenate([wv, wu], axis=1).T.astype(jnp.float32)        # (2H, C)
    b_fused = jnp.concatenate(
        [jnp.ravel(bv), jnp.ravel(bu)]).reshape(2 * hid, 1).astype(jnp.float32)
    ww_col = jnp.reshape(ww, (hid, 1)).astype(jnp.float32)                   # (H, 1)
    # bw dropped (softmax shift-invariance) — no kernel input needed.

    out = pl.pallas_call(
        gated_attention_kernel,
        out_shape=jax.ShapeDtypeStruct((b, n), jnp.float32),
        grid_spec=pltpu.PrefetchScalarGridSpec(
            num_scalar_prefetch=0,
            grid=(g,),
            in_specs=[
                pl.BlockSpec((c, b_tile * n), lambda i: (i, 0)),     # packed x tile
                pl.BlockSpec((2 * hid, c), lambda i: (0, 0)),        # fused W (resident)
                pl.BlockSpec((2 * hid, 1), lambda i: (0, 0)),        # fused bias
                pl.BlockSpec((hid, 1), lambda i: (0, 0)),            # ww
            ],
            out_specs=pl.BlockSpec((b_tile, n), lambda i: (i, 0)),
        ),
        compiler_params=pltpu.CompilerParams(
            dimension_semantics=("parallel",)),
    )(x_packed, w_fused, b_fused, ww_col)

    # (b, n) -> (b, 1, h, w): pure reshape.
    return out.reshape(b, 1, h, w_sp)


def _reference(x, wv, bv, wu, bu, ww, bw):
    b, c, h, w = x.shape
    xt = jnp.transpose(x, (0, 2, 3, 1)).reshape(b * h * w, c)
    v = jnp.tanh(xt @ wv + bv)
    u = jax.nn.sigmoid(xt @ wu + bu)
    s = (u * v) @ ww + bw
    s = s.reshape(b, h * w)
    att = jax.nn.softmax(s, axis=1)
    return jnp.transpose(att.reshape(b, h, w, 1), (0, 3, 1, 2))


if __name__ == "__main__":
    # Small shapes consistent with the module's forward:
    # embed_dim (=channels) = 32, hid_att_dim = 32, batch = 2, spatial = 8x8.
    embed_dim = 32
    hid_att_dim = 32
    b, h, w = 2, 8, 8

    key = jax.random.PRNGKey(0)
    kx, k1, k2, k3, k4, k5, k6 = jax.random.split(key, 7)

    x = jax.random.normal(kx, (b, embed_dim, h, w), dtype=jnp.float32)

    # Linear weights stored as (in, out), i.e. transposed vs PyTorch's (out, in).
    wv = 0.1 * jax.random.normal(k1, (embed_dim, hid_att_dim), jnp.float32)
    bv = 0.1 * jax.random.normal(k2, (1, hid_att_dim), jnp.float32)
    wu = 0.1 * jax.random.normal(k3, (embed_dim, hid_att_dim), jnp.float32)
    bu = 0.1 * jax.random.normal(k4, (1, hid_att_dim), jnp.float32)
    ww = 0.1 * jax.random.normal(k5, (hid_att_dim, 1), jnp.float32)
    bw = 0.1 * jax.random.normal(k6, (1, 1), jnp.float32)

    out = gated_attention(x, wv, bv, wu, bu, ww, bw)
    out = jax.block_until_ready(out)

    ref = _reference(x, wv, bv, wu, bu, ww, bw)
    assert out.shape == (b, 1, h, w), out.shape
    # Tolerance loosened from 1e-5 because the softmax normalization uses the
    # EUP approximate reciprocal (pl.reciprocal(..., approx=True)).
    assert jnp.allclose(out, ref, atol=1e-3, rtol=1e-3), "mismatch vs reference"

    print("KERNEL_OK")
</pallas_src>

<mosaic_0001>
module attributes {stable_mosaic.version = 11 : i64} {
  func.func @gated_attention_kernel(%arg0: i32, %arg1: memref<32x128xf32, #tpu.memory_space<vmem>>, %arg2: memref<64x32xf32, #tpu.memory_space<vmem>>, %arg3: memref<64x1xf32, #tpu.memory_space<vmem>>, %arg4: memref<32x1xf32, #tpu.memory_space<vmem>>, %arg5: memref<2x64xf32, #tpu.memory_space<vmem>>) attributes {dimension_semantics = [#tpu.dimension_semantics<parallel>], iteration_bounds = array<i64: 1>, scalar_prefetch = 0 : i64, scratch_operands = 0 : i64, tpu.core_type = #tpu.core_type<tc>, window_params = [{transform_indices = @transform_0, window_bounds = array<i64: 32, 128>}, {pipeline_mode = #tpu.pipeline_mode<synchronous>, transform_indices = @transform_1, window_bounds = array<i64: 64, 32>}, {pipeline_mode = #tpu.pipeline_mode<synchronous>, transform_indices = @transform_2, window_bounds = array<i64: 64, 1>}, {pipeline_mode = #tpu.pipeline_mode<synchronous>, transform_indices = @transform_3, window_bounds = array<i64: 32, 1>}, {transform_indices = @transform_4, window_bounds = array<i64: 2, 64>}]} {
    %c0 = arith.constant 0 : index
    %c0_0 = arith.constant 0 : index
    %0 = vector.load %arg2[%c0, %c0_0] : memref<64x32xf32, #tpu.memory_space<vmem>>, vector<64x32xf32>
    %c0_1 = arith.constant 0 : index
    %c0_2 = arith.constant 0 : index
    %1 = vector.load %arg1[%c0_1, %c0_2] : memref<32x128xf32, #tpu.memory_space<vmem>>, vector<32x128xf32>
    %cst = arith.constant dense<0.000000e+00> : vector<64x128xf32>
    %2 = tpu.matmul %0, %1, %cst {dimension_numbers = #tpu.dot_dimension_numbers<[1], [0], [0], [1], [0, 0, 1, 1], [], []>} : vector<64x32xf32>, vector<32x128xf32>, vector<64x128xf32> -> vector<64x128xf32>
    %c0_3 = arith.constant 0 : index
    %c0_4 = arith.constant 0 : index
    %3 = vector.load %arg3[%c0_3, %c0_4] : memref<64x1xf32, #tpu.memory_space<vmem>>, vector<64x1xf32>
    %4 = vector.broadcast %3 : vector<64x1xf32> to vector<64x128xf32>
    %5 = arith.addf %2, %4 : vector<64x128xf32>
    %6 = vector.extract_strided_slice %5 {offsets = [0, 0], sizes = [32, 128], strides = [1, 1]} : vector<64x128xf32> to vector<32x128xf32>
    %7 = math.tanh %6 : vector<32x128xf32>
    %8 = vector.extract_strided_slice %5 {offsets = [32, 0], sizes = [32, 128], strides = [1, 1]} : vector<64x128xf32> to vector<32x128xf32>
    %9 = arith.negf %8 : vector<32x128xf32>
    %10 = math.exp %9 : vector<32x128xf32>
    %cst_5 = arith.constant 1.000000e+00 : f32
    %11 = vector.broadcast %cst_5 : f32 to vector<32x128xf32>
    %12 = arith.addf %11, %10 : vector<32x128xf32>
    %13 = arith.divf %11, %12 : vector<32x128xf32>
    %14 = arith.mulf %13, %7 : vector<32x128xf32>
    %c0_6 = arith.constant 0 : index
    %c0_7 = arith.constant 0 : index
    %15 = vector.load %arg4[%c0_6, %c0_7] : memref<32x1xf32, #tpu.memory_space<vmem>>, vector<32x1xf32>
    %16 = vector.broadcast %15 : vector<32x1xf32> to vector<32x128xf32>
    %17 = arith.mulf %14, %16 : vector<32x128xf32>
    %cst_8 = arith.constant dense<0.000000e+00> : vector<128xf32>
    %18 = vector.multi_reduction <add>, %17, %cst_8 [0] : vector<32x128xf32> to vector<128xf32>
    %19 = vector.shape_cast %18 : vector<128xf32> to vector<1x128xf32>
    %20 = vector.extract_strided_slice %19 {offsets = [0, 0], sizes = [1, 64], strides = [1, 1]} : vector<1x128xf32> to vector<1x64xf32>
    %c0_9 = arith.constant 0 : index
    %c0_10 = arith.constant 0 : index
    %21 = vector.load %arg5[%c0_9, %c0_10] : memref<2x64xf32, #tpu.memory_space<vmem>>, vector<1x64xf32>
    tpu.vector_store %arg5[%c0_9, %c0_10], %20 {strides = array<i32>} : memref<2x64xf32, #tpu.memory_space<vmem>>, vector<1x64xf32>,
    %22 = vector.extract_strided_slice %19 {offsets = [0, 64], sizes = [1, 64], strides = [1, 1]} : vector<1x128xf32> to vector<1x64xf32>
    %c1 = arith.constant 1 : index
    %c0_11 = arith.constant 0 : index
    %23 = vector.load %arg5[%c1, %c0_11] : memref<2x64xf32, #tpu.memory_space<vmem>>, vector<1x64xf32>
    tpu.vector_store %arg5[%c1, %c0_11], %22 {strides = array<i32>} : memref<2x64xf32, #tpu.memory_space<vmem>>, vector<1x64xf32>,
    %c0_12 = arith.constant 0 : index
    %c0_13 = arith.constant 0 : index
    %24 = vector.load %arg5[%c0_12, %c0_13] : memref<2x64xf32, #tpu.memory_space<vmem>>, vector<2x64xf32>
    %cst_14 = arith.constant dense<0xFF800000> : vector<2xf32>
    %25 = vector.multi_reduction <maximumf>, %24, %cst_14 [1] : vector<2x64xf32> to vector<2xf32>
    %26 = vector.shape_cast %25 : vector<2xf32> to vector<2x1xf32>
    %27 = vector.broadcast %26 : vector<2x1xf32> to vector<2x64xf32>
    %28 = arith.subf %24, %27 : vector<2x64xf32>
    %29 = math.exp %28 : vector<2x64xf32>
    %cst_15 = arith.constant dense<0.000000e+00> : vector<2xf32>
    %30 = vector.multi_reduction <add>, %29, %cst_15 [1] : vector<2x64xf32> to vector<2xf32>
    %31 = vector.shape_cast %30 : vector<2xf32> to vector<2x1xf32>
    %32 = tpu.reciprocal %31 {approx = true} : vector<2x1xf32> -> vector<2x1xf32>
    %33 = vector.broadcast %32 : vector<2x1xf32> to vector<2x64xf32>
    %34 = arith.mulf %29, %33 : vector<2x64xf32>
    %c0_16 = arith.constant 0 : index
    %c0_17 = arith.constant 0 : index
    %35 = vector.load %arg5[%c0_16, %c0_17] : memref<2x64xf32, #tpu.memory_space<vmem>>, vector<2x64xf32>
    tpu.vector_store %arg5[%c0_16, %c0_17], %34 {strides = array<i32>} : memref<2x64xf32, #tpu.memory_space<vmem>>, vector<2x64xf32>,
    return
  }
  func.func @transform_0(%arg0: i32) -> (i32, i32) {
    %c0_i32 = arith.constant 0 : i32
    %c0_i32_0 = arith.constant 0 : i32
    return %arg0, %c0_i32 : i32, i32
  }
  func.func @transform_1(%arg0: i32) -> (i32, i32) {
    %c0_i32 = arith.constant 0 : i32
    %c0_i32_0 = arith.constant 0 : i32
    %c0_i32_1 = arith.constant 0 : i32
    return %c0_i32, %c0_i32_0 : i32, i32
  }
  func.func @transform_2(%arg0: i32) -> (i32, i32) {
    %c0_i32 = arith.constant 0 : i32
    %c0_i32_0 = arith.constant 0 : i32
    %c0_i32_1 = arith.constant 0 : i32
    return %c0_i32, %c0_i32_0 : i32, i32
  }
  func.func @transform_3(%arg0: i32) -> (i32, i32) {
    %c0_i32 = arith.constant 0 : i32
    %c0_i32_0 = arith.constant 0 : i32
    %c0_i32_1 = arith.constant 0 : i32
    return %c0_i32, %c0_i32_0 : i32, i32
  }
  func.func @transform_4(%arg0: i32) -> (i32, i32) {
    %c0_i32 = arith.constant 0 : i32
    %c0_i32_0 = arith.constant 0 : i32
    return %arg0, %c0_i32 : i32, i32
  }
}

</mosaic_0001>

<llo_original>
// kernel: tpu_custom_call.1
$region0: #{tpu_custom_call.1}
  #allocation0 [shape = 'u32[]', space=smem, size = 0x4, offset = 0x4, fixed_abs, tag = 'smem constant byte address 0x4 - core index']
  #allocation1 [shape = 'u32[72,128]{1,0:T(1,128)}', space=vmem, size = 0x9000, scoped, tag = 'internal scratch']
  %s0 = inlined_call_operand.vmem [shape: f32[32,128], index: 0, kind: input, shape index: {}]
  %s1 = inlined_call_operand.vmem [shape: f32[64,32], index: 1, kind: input, shape index: {}]
  %s2 = inlined_call_operand.vmem [shape: f32[64,1], index: 2, kind: input, shape index: {}]
  %s3 = inlined_call_operand.vmem [shape: f32[32,1], index: 3, kind: input, shape index: {}]
  %s4 = inlined_call_operand.hbm [shape: f32[2,64], index: 4, kind: output, shape index: {}]
  %s5 = sld [smem:[#allocation0]]
  $region26: #{tpu_custom_call.1} parent=0
    _
  %s7 = ssub.s32 1, %s5
  %s8 = scalar_select 0, %s7, %s5
  $region1: #{tpu_custom_call.1} parent=0
    #allocation2 [shape = 'u8[1024]{0}', space=vmem, size = 0x400, scoped, tag = 'output window, operand 0, single buffered']
    #allocation3 [shape = 's32[1]{0}', space=sflag, size = 0x4, scoped, tag = 'scoped memory for tpu_custom_call.1']
    %9 = vsyncpa [#allocation3], 0
    // Predicated region
    $region2: #{tpu_custom_call.1} parent=1 // pred_check
      _
    $region3: #{tpu_custom_call.1} parent=1 // pred_check_branch
      %11 = sbr.rel (0) target = $region5
    $region4: #{tpu_custom_call.1} parent=1 // pred_region
      _
    $region5: #{tpu_custom_call.1} parent=1 // pred_fallthru
      _
    // Predicated region
    $region6: #{tpu_custom_call.1} parent=1 // pred_check
      _
    $region7: #{tpu_custom_call.1} parent=1 // pred_check_branch
      %13 = sbr.rel (0) target = $region9
    $region8: #{tpu_custom_call.1} parent=1 // pred_region
      _
    $region9: #{tpu_custom_call.1} parent=1 // pred_fallthru
      _
    // Predicated region
    $region10: #{tpu_custom_call.1} parent=1 // pred_check
      _
    $region11: #{tpu_custom_call.1} parent=1 // pred_check_branch
      %15 = sbr.rel (0) target = $region13
    $region12: #{tpu_custom_call.1} parent=1 // pred_region
      _
    $region13: #{tpu_custom_call.1} parent=1 // pred_fallthru
      _
    // Predicated region
    $region14: #{tpu_custom_call.1} parent=1 // pred_check
      _
    $region15: #{tpu_custom_call.1} parent=1 // pred_check_branch
      %17 = sbr.rel (0) target = $region17
    $region16: #{tpu_custom_call.1} parent=1 // pred_region
      _
    $region17: #{tpu_custom_call.1} parent=1 // pred_fallthru
      _
    %v18 = vld [vmem:[%s1] sm:$0xff]
    %v19 = vld [vmem:[%s1 + $0x8] sm:$0xff]
    %v20 = vld [vmem:[%s1 + $0x10] sm:$0xff]
    %v21 = vld [vmem:[%s1 + $0x18] sm:$0xff]
    %v22 = vld [vmem:[%s1 + $0x20] sm:$0xff]
    %v23 = vld [vmem:[%s1 + $0x28] sm:$0xff]
    %v24 = vld [vmem:[%s1 + $0x30] sm:$0xff]
    %v25 = vld [vmem:[%s1 + $0x38] sm:$0xff]
    %v26 = vld [vmem:[%s0] sm:$0xff]
    %v27 = vld [vmem:[%s0 + $0x8] sm:$0xff]
    %v28 = vld [vmem:[%s0 + $0x10] sm:$0xff]
    %v29 = vld [vmem:[%s0 + $0x18] sm:$0xff]
    %v30 = vld [vmem:[%s2] sm:$0xff]
    %v31 = vld [vmem:[%s2 + $0x8] sm:$0xff]
    %v32 = vld [vmem:[%s2 + $0x10] sm:$0xff]
    %v33 = vld [vmem:[%s2 + $0x18] sm:$0xff]
    %v34 = vld [vmem:[%s2 + $0x20] sm:$0xff]
    %v35 = vld [vmem:[%s2 + $0x28] sm:$0xff]
    %v36 = vld [vmem:[%s2 + $0x30] sm:$0xff]
    %v37 = vld [vmem:[%s2 + $0x38] sm:$0xff]
    %39 = vset.pattern.permute.xlu0 0
    %40 = vperm.xlu0 %39, %v30
    %v41 = vpop.permute.xlu0 %40
    %44 = vset.pattern.permute.xlu0 0
    %45 = vperm.xlu0 %44, %v31
    %v46 = vpop.permute.xlu0 %45
    %49 = vset.pattern.permute.xlu0 0
    %50 = vperm.xlu0 %49, %v32
    %v51 = vpop.permute.xlu0 %50
    %54 = vset.pattern.permute.xlu0 0
    %55 = vperm.xlu0 %54, %v33
    %v56 = vpop.permute.xlu0 %55
    %59 = vset.pattern.permute.xlu0 0
    %60 = vperm.xlu0 %59, %v34
    %v61 = vpop.permute.xlu0 %60
    %64 = vset.pattern.permute.xlu0 0
    %65 = vperm.xlu0 %64, %v35
    %v66 = vpop.permute.xlu0 %65
    %69 = vset.pattern.permute.xlu0 0
    %70 = vperm.xlu0 %69, %v36
    %v71 = vpop.permute.xlu0 %70
    %74 = vset.pattern.permute.xlu0 0
    %75 = vperm.xlu0 %74, %v37
    %v76 = vpop.permute.xlu0 %75
    %vm78 = vcmask 261120
    %v80 = vsel %vm78, %v18, 0
    %v83 = vsel %vm78, %v19, 0
    %v86 = vsel %vm78, %v20, 0
    %v89 = vsel %vm78, %v21, 0
    %v92 = vsel %vm78, %v22, 0
    %v95 = vsel %vm78, %v23, 0
    %v98 = vsel %vm78, %v24, 0
    %v101 = vsel %vm78, %v25, 0
    %103 = vmatpush.msra.mxu0 0.0
    %104 = vmatpush.msra.mxu0 0.0
    %105 = vmatpush.msra.mxu0 0.0
    %106 = vmatpush.msra.mxu0 0.0
    %107 = vmatpush.msra.mxu0 0.0
    %108 = vmatpush.msra.mxu0 0.0
    %109 = vmatpush.msra.mxu0 0.0
    %110 = vmatpush.msra.mxu0 0.0
    %111 = vmatpush.msra.mxu0 0.0
    %112 = vmatpush.msra.mxu0 0.0
    %113 = vmatpush.msra.mxu0 0.0
    %114 = vmatpush.msra.mxu0 0.0
    %115 = vmatpush.msra.mxu0 %v29
    %116 = vmatpush.msra.mxu0 %v28
    %117 = vmatpush.msra.mxu0 %v27
    %118 = vmatpush.msra.mxu0 %v26
    %119 = vmatmul.f32.gmra.mxu0 %v80
    %v120 = vpop.f32.mrf.mxu0
    %v121 = vadd.f32 %v41, %v120
    %122 = vmatmul.f32.gmra.mxu0 %v83
    %v123 = vpop.f32.mrf.mxu0
    %v124 = vadd.f32 %v46, %v123
    %125 = vmatmul.f32.gmra.mxu0 %v86
    %v126 = vpop.f32.mrf.mxu0
    %v127 = vadd.f32 %v51, %v126
    %128 = vmatmul.f32.gmra.mxu0 %v89
    %v129 = vpop.f32.mrf.mxu0
    %v130 = vadd.f32 %v56, %v129
    %131 = vmatmul.f32.gmra.mxu0 %v92
    %v132 = vpop.f32.mrf.mxu0
    %v133 = vadd.f32 %v61, %v132
    %134 = vmatmul.f32.gmra.mxu0 %v95
    %v135 = vpop.f32.mrf.mxu0
    %v136 = vadd.f32 %v66, %v135
    %137 = vmatmul.f32.gmra.mxu0 %v98
    %v138 = vpop.f32.mrf.mxu0
    %v139 = vadd.f32 %v71, %v138
    %140 = vmatmul.f32.gmra.mxu0 %v101
    %v141 = vpop.f32.mrf.mxu0
    %v142 = vadd.f32 %v76, %v141
    %143 = vdwg.mxu0
    %v144 = vtanh.pop %v121
    %v145 = vtanh.pop %v124
    %v146 = vtanh.pop %v127
    %v147 = vtanh.pop %v130
    %v148 = vxor.u32 %v133, 2147483648
    %v149 = vxor.u32 %v136, 2147483648
    %v150 = vxor.u32 %v139, 2147483648
    %v151 = vxor.u32 %v142, 2147483648
    %v152 = vmul.f32 %v148, 1.442695
    %v153 = vpow.pop %v152
    %v154 = vmul.f32 %v149, 1.442695
    %v155 = vpow.pop %v154
    %v156 = vmul.f32 %v150, 1.442695
    %v157 = vpow.pop %v156
    %v158 = vmul.f32 %v151, 1.442695
    %v159 = vpow.pop %v158
    %v160 = vadd.f32 %v153, 1.0
    %v161 = vadd.f32 %v155, 1.0
    %v162 = vadd.f32 %v157, 1.0
    %v163 = vadd.f32 %v159, 1.0
    %v164 = vrcp.pop %v160
    %v165 = vmul.f32 %v160, %v164
    %v166 = vsub.f32 1.0, %v165
    %v167 = vmul.f32 %v164, %v166
    %v168 = vadd.f32 %v164, %v167
    %vm169 = vweird.f32 %v160
    %vm170 = vweird.f32 %v164
    %vm171 = vmor %vm169, %vm170
    %v172 = vsel %vm171, %v164, %v168
    %v173 = vand.u32 2147483647, %v160
    %vm174 = vcmp.eq.f32.partialorder %v173, 8.507059e+37
    %v175 = vand.u32 %v160, 2147483648
    %v176 = vor.u32 1.1754944e-38, %v175
    %v177 = vsel %vm174, %v176, %v172
    %v178 = vmul.f32 1.0, %v177
    %v179 = vrcp.pop %v161
    %v180 = vmul.f32 %v161, %v179
    %v181 = vsub.f32 1.0, %v180
    %v182 = vmul.f32 %v179, %v181
    %v183 = vadd.f32 %v179, %v182
    %vm184 = vweird.f32 %v161
    %vm185 = vweird.f32 %v179
    %vm186 = vmor %vm184, %vm185
    %v187 = vsel %vm186, %v179, %v183
    %v188 = vand.u32 2147483647, %v161
    %vm189 = vcmp.eq.f32.partialorder %v188, 8.507059e+37
    %v190 = vand.u32 %v161, 2147483648
    %v191 = vor.u32 1.1754944e-38, %v190
    %v192 = vsel %vm189, %v191, %v187
    %v193 = vmul.f32 1.0, %v192
    %v194 = vrcp.pop %v162
    %v195 = vmul.f32 %v162, %v194
    %v196 = vsub.f32 1.0, %v195
    %v197 = vmul.f32 %v194, %v196
    %v198 = vadd.f32 %v194, %v197
    %vm199 = vweird.f32 %v162
    %vm200 = vweird.f32 %v194
    %vm201 = vmor %vm199, %vm200
    %v202 = vsel %vm201, %v194, %v198
    %v203 = vand.u32 2147483647, %v162
    %vm204 = vcmp.eq.f32.partialorder %v203, 8.507059e+37
    %v205 = vand.u32 %v162, 2147483648
    %v206 = vor.u32 1.1754944e-38, %v205
    %v207 = vsel %vm204, %v206, %v202
    %v208 = vmul.f32 1.0, %v207
    %v209 = vrcp.pop %v163
    %v210 = vmul.f32 %v163, %v209
    %v211 = vsub.f32 1.0, %v210
    %v212 = vmul.f32 %v209, %v211
    %v213 = vadd.f32 %v209, %v212
    %vm214 = vweird.f32 %v163
    %vm215 = vweird.f32 %v209
    %vm216 = vmor %vm214, %vm215
    %v217 = vsel %vm216, %v209, %v213
    %v218 = vand.u32 2147483647, %v163
    %vm219 = vcmp.eq.f32.partialorder %v218, 8.507059e+37
    %v220 = vand.u32 %v163, 2147483648
    %v221 = vor.u32 1.1754944e-38, %v220
    %v222 = vsel %vm219, %v221, %v217
    %v223 = vmul.f32 1.0, %v222
    %v224 = vmul.f32 %v178, %v144
    %v225 = vmul.f32 %v193, %v145
    %v226 = vmul.f32 %v208, %v146
    %v227 = vmul.f32 %v223, %v147
    %v228 = vld [vmem:[%s3] sm:$0xff]
    %v229 = vld [vmem:[%s3 + $0x8] sm:$0xff]
    %v230 = vld [vmem:[%s3 + $0x10] sm:$0xff]
    %v231 = vld [vmem:[%s3 + $0x18] sm:$0xff]
    %233 = vset.pattern.permute.xlu0 0
    %234 = vperm.xlu0 %233, %v228
    %v235 = vpop.permute.xlu0 %234
    %238 = vset.pattern.permute.xlu0 0
    %239 = vperm.xlu0 %238, %v229
    %v240 = vpop.permute.xlu0 %239
    %243 = vset.pattern.permute.xlu0 0
    %244 = vperm.xlu0 %243, %v230
    %v245 = vpop.permute.xlu0 %244
    %248 = vset.pattern.permute.xlu0 0
    %249 = vperm.xlu0 %248, %v231
    %v250 = vpop.permute.xlu0 %249
    %v252 = vmul.f32 %v224, %v235
    %v253 = vmul.f32 %v225, %v240
    %v254 = vmul.f32 %v226, %v245
    %v255 = vmul.f32 %v227, %v250
    %v256 = vadd.f32 %v252, %v253
    %v257 = vadd.f32 %v256, %v254
    %v258 = vadd.f32 %v257, %v255
    %v259 = vrot.slane %v258, 4
    %v260 = vadd.f32 %v258, %v259
    %v261 = vrot.slane %v260, 2
    %v262 = vadd.f32 %v260, %v261
    %v263 = vrot.slane %v262, 1
    %v264 = vadd.f32 %v262, %v263
    %vm265 = vcmask 516096
    %266 = vst.msk [vmem:[#allocation2] sm:$0x1] %vm265, %v264
    %268 = vrot.lane.b32.xlu0 %v264, 64
    %v269 = vpop.permute.xlu0 %268
    %271 = vst.msk [vmem:[#allocation2 + $0x1] sm:$0x1] %vm265, %v269
    %v272 = vld [vmem:[#allocation2] sm:$0x3]
    %vm273 = vcmask 517120
    %v274 = vsel %vm273, %v272, -inf
    %275 = vmax.xlane.f32.xlu0 %v274
    %v276 = vpop.xlane.xlu0 %275
    %v277 = vsub.f32 %v272, %v276
    %v278 = vmul.f32 %v277, 1.442695
    %v279 = vpow.pop %v278
    %v280 = vsel %vm273, %v279, 0.0
    %281 = vadd.xlane.f32.xlu0 %v280
    %v282 = vpop.xlane.xlu0 %281
    %v283 = vrcp.pop %v282
    %v284 = vmul.f32 %v279, %v283
    %285 = vst.msk [vmem:[#allocation2] sm:$0x3] %vm273, %v284
    // Predicated region
    $region18: #{tpu_custom_call.1} parent=1 // pred_check
      _
    $region19: #{tpu_custom_call.1} parent=1 // pred_check_branch
      %287 = sbr.rel (0) target = $region21
    $region20: #{tpu_custom_call.1} parent=1 // pred_region
      %289 = vsyncadd [#allocation3], 0
      %s291 = sshll.u32 [#allocation2], 4
      %s292 = int_to_ptr.vmem [resolvable:$true] %s291
      %s293 = sshll.u32 %s4, 4
      %s294 = int_to_ptr.hbm [resolvable:$true] %s293
      %296 = dma.vmem_to_hbm [thread:$0]  %s292, 32, %s294, [#allocation3]
    $region21: #{tpu_custom_call.1} parent=1 // pred_fallthru
      _
    // Predicated region
    $region22: #{tpu_custom_call.1} parent=1 // pred_check
      _
    $region23: #{tpu_custom_call.1} parent=1 // pred_check_branch
      %298 = sbr.rel (0) target = $region25
    $region24: #{tpu_custom_call.1} parent=1 // pred_region
      %300 = dma.done [#allocation3], 32
    $region25: #{tpu_custom_call.1} parent=1 // pred_fallthru
      _
    %301 = vsyncpa [#allocation3], 1

</llo_original>
